<compile_context>
chip_gen: v7x
topology: tpu7x:2x2x1
jax: 0.10.0
libtpu: 0.0.40
codegen_flags: <defaults>
</compile_context>

<pallas_src>
import functools

import jax
import jax.numpy as jnp
from jax.experimental import pallas as pl
from jax.experimental.pallas import tpu as pltpu

_LANE = 128


def _round_up(x, m):
    return ((x + m - 1) // m) * m


def _label_embed_kernel(labels_ref, table_ref, out_ref, *, g, v):
    # labels_ref: (TR, G) int32  — G token ids per output row
    # table_ref : (Vk, Hk)       — block-diagonal expanded table (or plain table)
    # out_ref   : (TR, Hk)       — lane-dense tile of embeddings
    labels = labels_ref[...]                                   # (TR, G)
    vk = table_ref.shape[0]

    # Sentinel for out-of-range labels: vk (+ s*v) is > any column index, so it
    # never matches — preserves "zero embedding row" semantics and prevents
    # cross-slot corruption in the packed (G > 1) path.
    safe = jnp.where((labels >= 0) & (labels < v), labels, vk)  # (TR, G)

    # Single-row class iota; compares broadcast against (TR, 1) labels.
    col = jax.lax.broadcasted_iota(jnp.int32, (1, vk), 1)

    # OR-reduce of boolean compares, one cast at the end (G compares + G-1 ORs
    # + 1 cast instead of G compares + G casts + G-1 f32 adds).
    hit = col == safe[:, 0:1]
    for s in range(1, g):                                       # unrolled at trace time
        hit = jnp.logical_or(hit, col == (safe[:, s:s + 1] + s * v))
    onehot = hit.astype(table_ref.dtype)

    out_ref[...] = jnp.dot(
        onehot, table_ref[...], preferred_element_type=jnp.float32
    ).astype(out_ref.dtype)


def pack_embedding_table(embedding_table):
    """Precompute the lane-dense table expansion (hoistable out of the fwd path).

    Returns (table_k, G, V, H):
      table_k: (Vk, Hk) matrix fed to the kernel (Hk a multiple of 128)
      G:       tokens packed per output row
      V, H:    original table dims (num_classes + 1, hidden_size)
    """
    V, H = embedding_table.shape
    if H % _LANE == 0:
        return embedding_table, 1, V, H
    if _LANE % H == 0:
        G = _LANE // H
        # Block-diagonal (G*V, G*H): row g*V + c feeds lanes [g*H, (g+1)*H)
        # with table[c], so the matmul emits G embeddings side by side.
        table_k = jnp.kron(jnp.eye(G, dtype=embedding_table.dtype), embedding_table)
        return table_k, G, V, H
    # Fallback: pad hidden dim up to a lane multiple (sliced off afterwards).
    Hk = _round_up(H, _LANE)
    return jnp.pad(embedding_table, ((0, 0), (0, Hk - H))), 1, V, H


def label_embedder(labels, embedding_table, *, packed_table=None,
                   out_dtype=None, vmem_out_bytes=4 << 20):
    """Pallas equivalent of LabelEmbedder.forward.

    labels:          (B, S) integer array, values in [0, num_classes]
    embedding_table: (num_classes + 1, hidden_size)
    packed_table:    optional result of pack_embedding_table(embedding_table)
                     (pass it to hoist the table expansion out of the call)
    out_dtype:       output dtype (default: embedding_table.dtype); bf16 halves
                     the dominant HBM write traffic.
    returns:         (B, S, hidden_size)
    """
    B, S = labels.shape
    if packed_table is None:
        packed_table = pack_embedding_table(embedding_table)
    table_k, G, V, H = packed_table
    Vk, Hk = table_k.shape
    N = B * S
    out_dtype = jnp.dtype(out_dtype) if out_dtype is not None else table_k.dtype
    out_itemsize = jnp.dtype(out_dtype).itemsize
    table_itemsize = jnp.dtype(table_k.dtype).itemsize

    # ---- tile sizing from a VMEM byte budget ------------------------------
    row_out_bytes = Hk * out_itemsize
    TR_budget = max(8, (vmem_out_bytes // row_out_bytes) // 8 * 8)
    rows_needed = -(-N // G)                        # ceil(N / G)
    rows_ceil = _round_up(rows_needed, 8)
    if rows_ceil <= TR_budget:
        if rows_needed >= 2048:
            # Enough work to split across two TensorCores (v7x megacore).
            TR = _round_up(-(-rows_needed // 2), 8)
        else:
            TR = rows_ceil
    else:
        TR = TR_budget
    n_rows = _round_up(rows_needed, TR)
    N_pad = n_rows * G
    grid = (n_rows // TR,)

    # ---- prepare labels (no slot-offset pass: offsets folded into kernel) --
    labels_flat = labels.reshape(N).astype(jnp.int32)
    pad = N_pad - N
    if pad:
        labels_flat = jnp.pad(labels_flat, (0, pad))
    labels_rows = labels_flat.reshape(n_rows, G)

    # ---- VMEM budget / cost hints ------------------------------------------
    est_vmem = (2 * TR * Hk * out_itemsize          # double-buffered output tile
                + 2 * TR * G * 4                    # double-buffered labels tile
                + 2 * Vk * Hk * table_itemsize      # resident table (conservative x2)
                + 2 * TR * Vk * 4)                  # one-hot / bool temporaries
    vmem_limit = min(48 << 20, max(32 << 20, int(est_vmem * 1.25)))
    cost = pl.CostEstimate(
        flops=2 * n_rows * Vk * Hk,
        transcendentals=0,
        bytes_accessed=(n_rows * Hk * out_itemsize
                        + n_rows * G * 4
                        + Vk * Hk * table_itemsize),
    )

    # ---- kernel --------------------------------------------------------------
    out = pl.pallas_call(
        functools.partial(_label_embed_kernel, g=G, v=V),
        out_shape=jax.ShapeDtypeStruct((n_rows, Hk), out_dtype),
        grid=grid,
        in_specs=[
            pl.BlockSpec((TR, G), lambda i: (i, 0)),     # labels tile
            pl.BlockSpec((Vk, Hk), lambda i: (0, 0)),    # table: resident, DMA'd once
        ],
        out_specs=pl.BlockSpec((TR, Hk), lambda i: (i, 0)),
        compiler_params=pltpu.CompilerParams(
            dimension_semantics=("parallel",),
            vmem_limit_bytes=vmem_limit,
        ),
        cost_estimate=cost,
    )(labels_rows, table_k)

    # ---- unpack --------------------------------------------------------------
    if G > 1:
        # (n_rows, G*H) row-major is exactly (N_pad, H) row-major (free reinterp).
        out_flat = out.reshape(N_pad, H)
    else:
        out_flat = out[:, :H]                        # no-op unless H was padded
    return out_flat[:N].reshape(B, S, H)


if __name__ == "__main__":
    # Small, deterministic setup consistent with the module's __init__.
    num_classes = 10
    hidden_size = 32
    B, S = 2, 8

    key = jax.random.PRNGKey(0)
    k_table, k_labels = jax.random.split(key)

    # nn.Embedding default init: N(0, 1)
    embedding_table = jax.random.normal(
        k_table, (num_classes + 1, hidden_size), dtype=jnp.float32
    )
    labels = jax.random.randint(
        k_labels, (B, S), minval=0, maxval=num_classes + 1, dtype=jnp.int32
    )

    out = jax.block_until_ready(label_embedder(labels, embedding_table))
    ref = jnp.take(embedding_table, labels, axis=0)
    assert out.shape == (B, S, hidden_size)
    assert jnp.allclose(out, ref, atol=1e-6), "mismatch vs reference (packed path)"

    # Out-of-range labels: zero row, and neighboring packed tokens untouched.
    labels_oob = labels.at[0, 1].set(num_classes + 7)
    out_oob = jax.block_until_ready(label_embedder(labels_oob, embedding_table))
    ref_oob = jnp.take(embedding_table, labels, axis=0).at[0, 1].set(0.0)
    assert jnp.allclose(out_oob, ref_oob, atol=1e-6), "OOB label handling broken"

    # Lane-aligned hidden size + token count not divisible by the tile
    # (exercises the H % 128 == 0 path and padding/ceil-div logic).
    k_t2, k_l2 = jax.random.split(jax.random.PRNGKey(0), 2)
    nc2, h2, B2, S2 = 30, 256, 3, 100
    table2 = jax.random.normal(k_t2, (nc2 + 1, h2), dtype=jnp.float32)
    labels2 = jax.random.randint(k_l2, (B2, S2), 0, nc2 + 1, dtype=jnp.int32)
    out2 = jax.block_until_ready(label_embedder(labels2, table2))
    ref2 = jnp.take(table2, labels2, axis=0)
    assert out2.shape == (B2, S2, h2)
    assert jnp.allclose(out2, ref2, atol=1e-6), "mismatch vs reference (aligned path)"

    # bf16 output path (halves HBM write traffic) + pre-packed table reuse.
    packed = pack_embedding_table(embedding_table)
    out_bf16 = jax.block_until_ready(
        label_embedder(labels, embedding_table, packed_table=packed,
                       out_dtype=jnp.bfloat16)
    )
    assert out_bf16.dtype == jnp.bfloat16
    assert jnp.allclose(out_bf16.astype(jnp.float32), ref, atol=1e-2, rtol=1e-2)

    print("KERNEL_OK")
</pallas_src>

<mosaic_0001>
module attributes {stable_mosaic.version = 11 : i64} {
  func.func @_label_embed_kernel(%arg0: i32, %arg1: memref<8x4xi32, #tpu.memory_space<vmem>>, %arg2: memref<44x128xf32, #tpu.memory_space<vmem>>, %arg3: memref<8x128xf32, #tpu.memory_space<vmem>>) attributes {dimension_semantics = [#tpu.dimension_semantics<parallel>], iteration_bounds = array<i64: 1>, scalar_prefetch = 0 : i64, scratch_operands = 0 : i64, tpu.core_type = #tpu.core_type<tc>, window_params = [{transform_indices = @transform_0, window_bounds = array<i64: 8, 4>}, {pipeline_mode = #tpu.pipeline_mode<synchronous>, transform_indices = @transform_1, window_bounds = array<i64: 44, 128>}, {transform_indices = @transform_2, window_bounds = array<i64: 8, 128>}]} {
    %c0 = arith.constant 0 : index
    %c0_0 = arith.constant 0 : index
    %0 = vector.load %arg1[%c0, %c0_0] : memref<8x4xi32, #tpu.memory_space<vmem>>, vector<8x4xi32>
    %c0_i32 = arith.constant 0 : i32
    %1 = vector.broadcast %c0_i32 : i32 to vector<8x4xi32>
    %2 = arith.cmpi sge, %0, %1 : vector<8x4xi32>
    %c11_i32 = arith.constant 11 : i32
    %3 = vector.broadcast %c11_i32 : i32 to vector<8x4xi32>
    %4 = arith.cmpi slt, %0, %3 : vector<8x4xi32>
    %5 = arith.andi %2, %4 : vector<8x4xi1>
    %c44_i32 = arith.constant 44 : i32
    %6 = vector.broadcast %c44_i32 : i32 to vector<8x4xi32>
    %7 = arith.select %5, %0, %6 : vector<8x4xi1>, vector<8x4xi32>
    %8 = tpu.iota {dimensions = array<i32: 1>} : vector<1x44xi32>
    %9 = vector.extract_strided_slice %7 {offsets = [0, 0], sizes = [8, 1], strides = [1, 1]} : vector<8x4xi32> to vector<8x1xi32>
    %10 = vector.broadcast %8 : vector<1x44xi32> to vector<8x44xi32>
    %11 = vector.broadcast %9 : vector<8x1xi32> to vector<8x44xi32>
    %12 = arith.cmpi eq, %10, %11 : vector<8x44xi32>
    %13 = vector.extract_strided_slice %7 {offsets = [0, 1], sizes = [8, 1], strides = [1, 1]} : vector<8x4xi32> to vector<8x1xi32>
    %c11_i32_1 = arith.constant 11 : i32
    %14 = vector.broadcast %c11_i32_1 : i32 to vector<8x1xi32>
    %15 = arith.addi %13, %14 : vector<8x1xi32>
    %16 = vector.broadcast %8 : vector<1x44xi32> to vector<8x44xi32>
    %17 = vector.broadcast %15 : vector<8x1xi32> to vector<8x44xi32>
    %18 = arith.cmpi eq, %16, %17 : vector<8x44xi32>
    %19 = arith.ori %12, %18 : vector<8x44xi1>
    %20 = vector.extract_strided_slice %7 {offsets = [0, 2], sizes = [8, 1], strides = [1, 1]} : vector<8x4xi32> to vector<8x1xi32>
    %c22_i32 = arith.constant 22 : i32
    %21 = vector.broadcast %c22_i32 : i32 to vector<8x1xi32>
    %22 = arith.addi %20, %21 : vector<8x1xi32>
    %23 = vector.broadcast %8 : vector<1x44xi32> to vector<8x44xi32>
    %24 = vector.broadcast %22 : vector<8x1xi32> to vector<8x44xi32>
    %25 = arith.cmpi eq, %23, %24 : vector<8x44xi32>
    %26 = arith.ori %19, %25 : vector<8x44xi1>
    %27 = vector.extract_strided_slice %7 {offsets = [0, 3], sizes = [8, 1], strides = [1, 1]} : vector<8x4xi32> to vector<8x1xi32>
    %c33_i32 = arith.constant 33 : i32
    %28 = vector.broadcast %c33_i32 : i32 to vector<8x1xi32>
    %29 = arith.addi %27, %28 : vector<8x1xi32>
    %30 = vector.broadcast %8 : vector<1x44xi32> to vector<8x44xi32>
    %31 = vector.broadcast %29 : vector<8x1xi32> to vector<8x44xi32>
    %32 = arith.cmpi eq, %30, %31 : vector<8x44xi32>
    %33 = arith.ori %26, %32 : vector<8x44xi1>
    %34 = arith.extui %33 : vector<8x44xi1> to vector<8x44xi32>
    %35 = arith.sitofp %34 : vector<8x44xi32> to vector<8x44xf32>
    %c0_2 = arith.constant 0 : index
    %c0_3 = arith.constant 0 : index
    %36 = vector.load %arg2[%c0_2, %c0_3] : memref<44x128xf32, #tpu.memory_space<vmem>>, vector<44x128xf32>
    %cst = arith.constant dense<0.000000e+00> : vector<8x128xf32>
    %37 = tpu.matmul %35, %36, %cst {dimension_numbers = #tpu.dot_dimension_numbers<[1], [0], [0], [1], [0, 0, 1, 1], [], []>} : vector<8x44xf32>, vector<44x128xf32>, vector<8x128xf32> -> vector<8x128xf32>
    %c0_4 = arith.constant 0 : index
    %c0_5 = arith.constant 0 : index
    %38 = vector.load %arg3[%c0_4, %c0_5] : memref<8x128xf32, #tpu.memory_space<vmem>>, vector<8x128xf32>
    tpu.vector_store %arg3[%c0_4, %c0_5], %37 {strides = array<i32>} : memref<8x128xf32, #tpu.memory_space<vmem>>, vector<8x128xf32>,
    return
  }
  func.func @transform_0(%arg0: i32) -> (i32, i32) {
    %c0_i32 = arith.constant 0 : i32
    %c0_i32_0 = arith.constant 0 : i32
    return %arg0, %c0_i32 : i32, i32
  }
  func.func @transform_1(%arg0: i32) -> (i32, i32) {
    %c0_i32 = arith.constant 0 : i32
    %c0_i32_0 = arith.constant 0 : i32
    %c0_i32_1 = arith.constant 0 : i32
    return %c0_i32, %c0_i32_0 : i32, i32
  }
  func.func @transform_2(%arg0: i32) -> (i32, i32) {
    %c0_i32 = arith.constant 0 : i32
    %c0_i32_0 = arith.constant 0 : i32
    return %arg0, %c0_i32 : i32, i32
  }
}

</mosaic_0001>

<llo_original>
// kernel: tpu_custom_call.1
$region0: #{tpu_custom_call.1}
  #allocation0 [shape = 'u32[]', space=smem, size = 0x4, offset = 0x4, fixed_abs, tag = 'smem constant byte address 0x4 - core index']
  #allocation1 [shape = 'u32[144,128]{1,0:T(1,128)}', space=vmem, size = 0x12000, scoped, tag = 'internal scratch']
  %s0 = inlined_call_operand.vmem [shape: s32[8,4], index: 0, kind: input, shape index: {}]
  %s1 = inlined_call_operand.hbm [shape: f32[44,128], index: 1, kind: input, shape index: {}]
  %s2 = inlined_call_operand.hbm [shape: f32[8,128], index: 2, kind: output, shape index: {}]
  %s3 = sld [smem:[#allocation0]]
  $region22: #{tpu_custom_call.1} parent=0
    _
  %s5 = ssub.s32 1, %s3
  %s6 = scalar_select 0, %s5, %s3
  $region1: #{tpu_custom_call.1} parent=0
    #allocation2 [shape = 'u8[24576]{0}', space=vmem, size = 0x6000, scoped, tag = 'input window, operand 1, single buffered']
    #allocation3 [shape = 's32[1]{0}', space=sflag, size = 0x4, scoped, tag = 'scoped memory for tpu_custom_call.1']
    #allocation4 [shape = 's32[1]{0}', space=sflag, size = 0x4, scoped, tag = 'scoped memory for tpu_custom_call.1']
    #allocation5 [shape = 'u8[4096]{0}', space=vmem, size = 0x1000, scoped, tag = 'output window, operand 0, single buffered']
    %7 = vsyncpa [#allocation3], 0
    %8 = vsyncpa [#allocation4], 0
    // Predicated region
    $region2: #{tpu_custom_call.1} parent=1 // pred_check
      _
    $region3: #{tpu_custom_call.1} parent=1 // pred_check_branch
      %10 = sbr.rel (0) target = $region5
    $region4: #{tpu_custom_call.1} parent=1 // pred_region
      _
    $region5: #{tpu_custom_call.1} parent=1 // pred_fallthru
      _
    // Predicated region
    $region6: #{tpu_custom_call.1} parent=1 // pred_check
      _
    $region7: #{tpu_custom_call.1} parent=1 // pred_check_branch
      %12 = sbr.rel (0) target = $region9
    $region8: #{tpu_custom_call.1} parent=1 // pred_region
      %s14 = ssub.s32 768, 768
      %15 = vsyncadd [#allocation3], %s14
      %s16 = sshll.u32 [#allocation2], 4
      %s17 = int_to_ptr.vmem [resolvable:$true] %s16
      %22 = dma.hbm_to_vmem [thread:$0]  %s1, 768, %s17, [#allocation3], 128, 128, 8
    $region9: #{tpu_custom_call.1} parent=1 // pred_fallthru
      _
    // Predicated region
    $region10: #{tpu_custom_call.1} parent=1 // pred_check
      _
    $region11: #{tpu_custom_call.1} parent=1 // pred_check_branch
      %24 = sbr.rel (0) target = $region13
    $region12: #{tpu_custom_call.1} parent=1 // pred_region
      %25 = dma.done [#allocation3], 768
    $region13: #{tpu_custom_call.1} parent=1 // pred_fallthru
      _
    %v26 = vld [vmem:[%s0] sm:$0xff]
    %vm27 = vcmp.ge.s32.totalorder %v26, 0
    %vm28 = vcmp.lt.s32.totalorder %v26, 11
    %vm29 = vmand %vm27, %vm28
    %v30 = vsel %vm29, %v26, 44
    %v31 = vlaneseq
    %v32 = vand.u32 %v31, 127
    %33 = vset.pattern.permute.xlu0 0
    %34 = vperm.xlu0 %33, %v30
    %v35 = vpop.permute.xlu0 %34
    %vm36 = vcmp.eq.s32.totalorder %v32, %v35
    %v37 = vadd.s32 %v30, 11
    %38 = vset.pattern.permute.xlu0 1
    %39 = vperm.xlu0 %38, %v37
    %v40 = vpop.permute.xlu0 %39
    %vm41 = vcmp.eq.s32.totalorder %v32, %v40
    %vm42 = vmor %vm36, %vm41
    %v43 = vadd.s32 %v30, 22
    %44 = vset.pattern.permute.xlu0 2
    %45 = vperm.xlu0 %44, %v43
    %v46 = vpop.permute.xlu0 %45
    %vm47 = vcmp.eq.s32.totalorder %v32, %v46
    %vm48 = vmor %vm42, %vm47
    %v49 = vadd.s32 %v30, 33
    %50 = vset.pattern.permute.xlu0 3
    %51 = vperm.xlu0 %50, %v49
    %v52 = vpop.permute.xlu0 %51
    %vm53 = vcmp.eq.s32.totalorder %v32, %v52
    %vm54 = vmor %vm48, %vm53
    %v55 = vsel %vm54, 1, 0
    %v56 = vcvt.s32.f32 %v55
    %v57 = vld [vmem:[#allocation2] sm:$0xff]
    %v58 = vld [vmem:[#allocation2 + $0x8] sm:$0xff]
    %v59 = vld [vmem:[#allocation2 + $0x10] sm:$0xff]
    %v60 = vld [vmem:[#allocation2 + $0x18] sm:$0xff]
    %v61 = vld [vmem:[#allocation2 + $0x20] sm:$0xff]
    %v62 = vld [vmem:[#allocation2 + $0x28] sm:$0xf]
    %vm63 = vcmask 359424
    %v65 = vsel %vm63, %v56, 0
    %vm67 = vcmask 1043456
    %v69 = vsel %vm67, %v62, 0
    %71 = vmatprep.subr.mxu0 0.0
    %72 = vmatpush1.msra.mxu0 %v57
    %73 = vmatprep.subr.mxu0 0.0
    %74 = vmatpush1.msra.mxu0 %v58
    %75 = vmatprep.subr.mxu0 0.0
    %76 = vmatpush1.msra.mxu0 %v59
    %77 = vmatprep.subr.mxu0 0.0
    %78 = vmatpush1.msra.mxu0 %v60
    %79 = vmatprep.subr.mxu0 0.0
    %80 = vmatpush1.msra.mxu0 %v61
    %81 = vmatprep.subr.mxu0 0.0
    %82 = vmatpush1.msra.mxu0 %v69
    %83 = vmatprep.subr.mxu0 0.0
    %84 = vmatpush1.msra.mxu0 0.0
    %85 = vmatprep.subr.mxu0 0.0
    %86 = vmatpush1.msra.mxu0 0.0
    %87 = vmatprep.subr.mxu0 0.0
    %88 = vmatpush1.msra.mxu0 0.0
    %89 = vmatprep.subr.mxu0 0.0
    %90 = vmatpush1.msra.mxu0 0.0
    %91 = vmatprep.subr.mxu0 0.0
    %92 = vmatpush1.msra.mxu0 0.0
    %93 = vmatprep.subr.mxu0 0.0
    %94 = vmatpush1.msra.mxu0 0.0
    %95 = vmatprep.subr.mxu0 0.0
    %96 = vmatpush1.msra.mxu0 0.0
    %97 = vmatprep.subr.mxu0 0.0
    %98 = vmatpush1.msra.mxu0 0.0
    %99 = vmatprep.subr.mxu0 0.0
    %100 = vmatpush1.msra.mxu0 0.0
    %101 = vmatprep.subr.mxu0 0.0
    %102 = vmatpush1.msra.mxu0 0.0
    %103 = vmatprep.subr.mxu0 0.0
    %104 = vmatpush1.msra.mxu0 0.0
    %105 = vmatprep.subr.mxu0 0.0
    %106 = vmatpush1.msra.mxu0 0.0
    %107 = vmatprep.subr.mxu0 0.0
    %108 = vmatpush1.msra.mxu0 0.0
    %109 = vmatprep.subr.mxu0 0.0
    %110 = vmatpush1.msra.mxu0 0.0
    %111 = vmatprep.subr.mxu0 0.0
    %112 = vmatpush1.msra.mxu0 0.0
    %113 = vmatprep.subr.mxu0 0.0
    %114 = vmatpush1.msra.mxu0 0.0
    %115 = vmatprep.subr.mxu0 0.0
    %116 = vmatpush1.msra.mxu0 0.0
    %117 = vmatprep.subr.mxu0 0.0
    %118 = vmatpush1.msra.mxu0 0.0
    %119 = vmatprep.subr.mxu0 0.0
    %120 = vmatpush1.msra.mxu0 0.0
    %121 = vmatprep.subr.mxu0 0.0
    %122 = vmatpush1.msra.mxu0 0.0
    %123 = vmatprep.subr.mxu0 0.0
    %124 = vmatpush1.msra.mxu0 0.0
    %125 = vmatprep.subr.mxu0 0.0
    %126 = vmatpush1.msra.mxu0 0.0
    %127 = vmatprep.subr.mxu0 0.0
    %128 = vmatpush1.msra.mxu0 0.0
    %129 = vmatprep.subr.mxu0 0.0
    %130 = vmatpush1.msra.mxu0 0.0
    %131 = vmatprep.subr.mxu0 0.0
    %132 = vmatpush1.msra.mxu0 0.0
    %133 = vmatprep.subr.mxu0 0.0
    %134 = vmatpush1.msra.mxu0 0.0
    %135 = vmatprep.mubr.f32.mxu0 0.0
    %136 = vmatmul.mubr.f32.gmra.mrb[0].mxu0 %v65
    %v137 = vpop.f32.mrb[0].mxu0
    %v138 = vadd.f32 0.0, %v137
    %v139 = vpop.f32.mrb[0].mxu0
    %140 = vdwg.mxu0
    %141 = vst [vmem:[#allocation5] sm:$0xff] %v138
    // Predicated region
    $region14: #{tpu_custom_call.1} parent=1 // pred_check
      _
    $region15: #{tpu_custom_call.1} parent=1 // pred_check_branch
      %143 = sbr.rel (0) target = $region17
    $region16: #{tpu_custom_call.1} parent=1 // pred_region
      %s145 = ssub.s32 128, 128
      %146 = vsyncadd [#allocation4], %s145
      %s148 = sshll.u32 [#allocation5], 4
      %s149 = int_to_ptr.vmem [resolvable:$true] %s148
      %151 = dma.vmem_to_hbm [thread:$0]  %s149, 128, %s2, [#allocation4]
    $region17: #{tpu_custom_call.1} parent=1 // pred_fallthru
      _
    // Predicated region
    $region18: #{tpu_custom_call.1} parent=1 // pred_check
      _
    $region19: #{tpu_custom_call.1} parent=1 // pred_check_branch
      %153 = sbr.rel (0) target = $region21
    $region20: #{tpu_custom_call.1} parent=1 // pred_region
      %154 = dma.done [#allocation4], 128
    $region21: #{tpu_custom_call.1} parent=1 // pred_fallthru
      _
    %155 = vsyncpa [#allocation3], 1
    %156 = vsyncpa [#allocation4], 1

</llo_original>
